<compile_context>
chip_gen: v7x
topology: tpu7x:2x2x1
jax: 0.10.0
libtpu: 0.0.40
codegen_flags: <defaults>
</compile_context>

<pallas_src>
import jax
import jax.numpy as jnp
from jax import lax
from jax.experimental import pallas as pl
from jax.experimental.pallas import tpu as pltpu


# ----------------------------- plain-JAX glue ------------------------------ #

def l2_normalize(x, axis=-1, eps=1e-12):
    # matches F.normalize: x / max(||x||, eps)
    n = jnp.sqrt(jnp.sum(x * x, axis=axis, keepdims=True))
    return x / jnp.maximum(n, eps)


def _log_bessel_iv_approx(nu, z):
    # Uniform asymptotic expansion of log I_nu(z) (standard vMF approximation).
    s = jnp.sqrt(nu * nu + z * z)
    return (s + nu * jnp.log(z / (nu + s))
            - 0.5 * jnp.log(2.0 * jnp.pi) - 0.25 * jnp.log(nu * nu + z * z))


def log_vmf_norm_const(kappa, dim):
    # TODO(synk): exact `log_vmf_norm_const` was not provided with the module;
    # using the standard log C_p(kappa) with an asymptotic Bessel approximation.
    nu = dim / 2.0 - 1.0
    return (nu * jnp.log(kappa) - (dim / 2.0) * jnp.log(2.0 * jnp.pi)
            - _log_bessel_iv_approx(nu, kappa))


def vmf_rsample(key, mu, kappa, n_samples, n_tries=32):
    """Wood's algorithm vMF sampler (vectorized, fixed proposal rounds).

    mu: (B, D) unit vectors, kappa: (B, 1). Returns (n_samples, B, D).
    """
    # TODO(synk): exact `vmf(...).rsample` was not provided; stochastic
    # rejection sampling is done in plain JAX (no clean Pallas equivalent).
    B, D = mu.shape
    p = float(D)
    kap = kappa.reshape(B)
    b = (-2.0 * kap + jnp.sqrt(4.0 * kap * kap + (p - 1.0) ** 2)) / (p - 1.0)
    x0 = (1.0 - b) / (1.0 + b)
    c = kap * x0 + (p - 1.0) * jnp.log(1.0 - x0 * x0)

    k1, k2, k3 = jax.random.split(key, 3)
    z = jax.random.beta(k1, (p - 1.0) / 2.0, (p - 1.0) / 2.0,
                        shape=(n_tries, n_samples, B))
    u = jax.random.uniform(k2, shape=(n_tries, n_samples, B),
                           minval=1e-7, maxval=1.0)
    w_prop = (1.0 - (1.0 + b) * z) / (1.0 - (1.0 - b) * z)
    accept = (kap * w_prop + (p - 1.0) * jnp.log(1.0 - x0 * w_prop) - c) >= jnp.log(u)
    first = jnp.argmax(accept, axis=0)                       # (S, B)
    w = jnp.take_along_axis(w_prop, first[None], axis=0)[0]  # (S, B)

    v = jax.random.normal(k3, shape=(n_samples, B, D))
    v = v - jnp.sum(v * mu[None], axis=-1, keepdims=True) * mu[None]
    v = l2_normalize(v, axis=-1)
    w = w[..., None]
    return w * mu[None] + jnp.sqrt(jnp.clip(1.0 - w * w, 0.0, None)) * v


# ------------------------------ Pallas kernel ------------------------------ #

def _nivmf_loss_kernel(samples_ref, mu2t_ref, bias_ref, y_ref, out_ref):
    S, TB, D = samples_ref.shape
    CP = mu2t_ref.shape[1]

    # One MXU matmul per batch tile: (S*TB, D) @ (D, CP), f32 accumulation.
    # coeff is folded into the RHS, so `scores` is already norm_mu2 * cos_sim.
    lhs = samples_ref[...].reshape(S * TB, D)   # leading-dim merge; TB % 8 == 0 -> free
    scores = jnp.dot(lhs, mu2t_ref[...], preferred_element_type=jnp.float32)
    scores = scores.reshape(S, TB, CP)          # (S, TB, CP)

    # logsumexp over the sample axis; the per-class bias is constant over S so
    # it is deferred to the reduced (TB, CP) tensor.
    m = jnp.max(scores, axis=0)                 # (TB, CP)
    # TODO(synk): on v6e/v7x a bf16 exp here ~doubles EUP throughput if
    # profiling shows the EUP slot binds (not valid on v5e); kept f32.
    sim = m + jnp.log(jnp.sum(jnp.exp(scores - m[None]), axis=0))
    sim = sim + bias_ref[...]                   # padded classes get -1e30 here

    # gather sim[b, y[b]] via one-hot, then class logsumexp, per-row loss.
    y = y_ref[...]                              # (TB, 1) int32
    iota = lax.broadcasted_iota(jnp.int32, sim.shape, 1)
    onehot = (iota == y).astype(sim.dtype)
    gathered = jnp.sum(sim * onehot, axis=1, keepdims=True)            # (TB, 1)
    row_max = jnp.max(sim, axis=1, keepdims=True)
    lse = row_max + jnp.log(jnp.sum(jnp.exp(sim - row_max), axis=1,
                                    keepdims=True))                    # (TB, 1)
    loss = lse - gathered                                              # (TB, 1)
    # lane-dense output slab (unmasked stores); column 0 is sliced outside.
    out_ref[...] = jnp.broadcast_to(loss, (TB, out_ref.shape[1]))


def _round_up(x, m):
    return (x + m - 1) // m * m


def nivmf_loss_pallas(samples, mu2_scaled, bias, y):
    """samples (S,B,D) f32, mu2_scaled (C,D) = normalize(class_mu)*class_kappa,
    bias (C,) = logcp + detterm - log(S), y (B,) int. Returns per-row loss (B,)."""
    S, B, D = samples.shape
    C = mu2_scaled.shape[0]
    CP = _round_up(C, 128)                    # lane-dense class dimension
    NEG = jnp.float32(-1e30)                  # "-inf" that stays NaN-free

    # Batch tile: multiple of 8 (sublane-aligned reshape), sized so the f32
    # scores tile 4*S*TB*CP stays within ~24 MiB (v7x has only 64 MiB VMEM).
    scores_budget = 24 * 1024 * 1024
    tb_cap = max(8, (scores_budget // (4 * S * CP)) // 8 * 8)
    TB = int(min(_round_up(B, 8), tb_cap, 256))
    BP = _round_up(B, TB)
    n_tiles = BP // TB

    # f32 matmul operands: contraction depth D is small, so the MXU is not the
    # bottleneck either way; f32 avoids coeff-amplified bf16 rounding error.
    samples_p = jnp.zeros((S, BP, D), jnp.float32).at[:, :B, :].set(
        samples.astype(jnp.float32))                                   # (S, BP, D)
    mu2t = jnp.zeros((D, CP), jnp.float32).at[:, :C].set(
        mu2_scaled.T.astype(jnp.float32))                              # (D, CP)
    bias2 = jnp.full((1, CP), NEG, jnp.float32).at[:, :C].set(
        bias.astype(jnp.float32))
    y2 = jnp.zeros((BP, 1), jnp.int32).at[:B, 0].set(y.astype(jnp.int32))

    # Explicit VMEM budget: double-buffered samples tile + resident RHS/bias +
    # the f32 scores/sim intermediates + the (TB, 128) output slab.
    est = (2 * S * TB * D * 4 + 2 * D * CP * 4 + 2 * CP * 4 + 4 * TB * 4
           + 2 * TB * 128 * 4 + 4 * S * TB * CP + 4 * 4 * TB * CP)
    vmem_limit = int(min(56 * 1024 * 1024, max(16 * 1024 * 1024, 2 * est)))

    cost = pl.CostEstimate(
        flops=2 * S * BP * D * CP,
        transcendentals=S * BP * CP + 2 * BP * CP,
        bytes_accessed=(samples_p.size + mu2t.size + bias2.size + y2.size
                        + BP * 128) * 4,
    )

    out = pl.pallas_call(
        _nivmf_loss_kernel,
        out_shape=jax.ShapeDtypeStruct((BP, 128), jnp.float32),
        grid_spec=pltpu.PrefetchScalarGridSpec(
            num_scalar_prefetch=0,
            grid=(n_tiles,),                              # batch tiles, pipelined
            in_specs=[
                pl.BlockSpec((S, TB, D), lambda i: (0, i, 0)),
                # Constant blocks (re-fetch is skipped by the pipeliner).
                # TODO(synk): pipeline_mode=pl.Buffered(1) would drop the unused
                # second buffer on these; left at default for lowering
                # portability (negligible at these sizes).
                pl.BlockSpec((D, CP), lambda i: (0, 0)),
                pl.BlockSpec((1, CP), lambda i: (0, 0)),
                pl.BlockSpec((TB, 1), lambda i: (i, 0)),
            ],
            out_specs=pl.BlockSpec((TB, 128), lambda i: (i, 0)),
        ),
        compiler_params=pltpu.CompilerParams(
            dimension_semantics=("parallel",),            # megacore-shardable on v7x
            vmem_limit_bytes=vmem_limit),
        cost_estimate=cost,
        # NOTE: for production class counts (C in the thousands), add a trailing
        # "arbitrary" grid axis over CP tiles with running max/sum scratch
        # (pl.when init/finalize); unnecessary at these shapes.
    )(samples_p, mu2t, bias2, y2)
    return out[:B, 0]                                     # (B,)


# --------------------------- module-level forward --------------------------- #

class NonIsotropicVMF:
    def __init__(self, n_classes=16, embed_dim=32, n_samples=16, inv_temp=10.0):
        self.num_proxies = n_classes
        self.embed_dim = embed_dim
        self.n_samples = n_samples
        self.inv_temp = jnp.ones((1,), jnp.float32) * inv_temp
        # nn.init.constant_(self.kappa.weight, inv_temp)
        self.kappa_weight = jnp.full((n_classes, embed_dim), inv_temp, jnp.float32)
        # self.proxies (weight-normed Linear) is initialized but unused in forward.

    def forward(self, key, pred, unc, y, features, classifier_weight):
        C, D = classifier_weight.shape
        S = self.n_samples

        class_mu = l2_normalize(classifier_weight, axis=-1)
        class_kappa = jnp.maximum(self.kappa_weight, 0.1)
        batch_mu = l2_normalize(features, axis=-1)
        batch_kappa = 1.0 / unc

        # --- nivmf_elk_sim(batch_mu, batch_kappa, class_mu, class_kappa, S) ---
        kappa1 = batch_kappa[:, None]                       # (B, 1)
        mu1 = l2_normalize(batch_mu, axis=-1)
        mu2 = l2_normalize(class_mu, axis=-1)
        samples = vmf_rsample(key, mu1, kappa1, S)          # (S, B, D)

        # coeff is folded into the matmul RHS: samples @ (mu2*kappa2)^T == norm_mu2*cos.
        mu2_scaled = mu2 * class_kappa                                   # (C, D)
        norm_mu2 = jnp.sqrt(jnp.sum(mu2_scaled * mu2_scaled, axis=-1))   # (C,)
        logcp = log_vmf_norm_const(norm_mu2, dim=D)                      # (C,)
        detterm = jnp.sum(jnp.log(class_kappa), axis=-1) - 2.0 * jnp.log(norm_mu2)
        bias = logcp + detterm - jnp.log(jnp.float32(S))    # constant over samples -> deferred

        # Pallas: per-batch-tile (S*TB,D)@(D,Cpad) matmul + sample logsumexp
        # + deferred bias + label gather + class logsumexp -> per-row loss.
        per_row = nivmf_loss_pallas(samples, mu2_scaled, bias, y)        # (B,)
        # Reference `(-gather + lse).mean()` broadcasts (B,1)+(B,) to (B,B), but
        # its mean equals the per-row mean computed here.
        return jnp.mean(per_row)


# ---------------------------------- main ----------------------------------- #

if __name__ == "__main__":
    B, C, D, S = 8, 16, 32, 16
    key = jax.random.PRNGKey(0)
    k_feat, k_cls, k_unc, k_y, k_pred, k_smp = jax.random.split(key, 6)

    features = jax.random.normal(k_feat, (B, D), jnp.float32)
    classifier_weight = jax.random.normal(k_cls, (C, D), jnp.float32)
    unc = jax.random.uniform(k_unc, (B,), jnp.float32, minval=0.05, maxval=0.2)
    y = jax.random.randint(k_y, (B,), 0, C, jnp.int32)
    pred = jax.random.normal(k_pred, (B, C), jnp.float32)   # unused by forward

    module = NonIsotropicVMF(n_classes=C, embed_dim=D, n_samples=S, inv_temp=10.0)
    loss = module.forward(k_smp, pred, unc, y, features, classifier_weight)
    loss = jax.block_until_ready(loss)
    assert loss.shape == () and jnp.isfinite(loss)
    print("KERNEL_OK")
</pallas_src>

<mosaic_0001>
module attributes {stable_mosaic.version = 11 : i64} {
  func.func @_nivmf_loss_kernel(%arg0: i32, %arg1: memref<16x8x32xf32, #tpu.memory_space<vmem>>, %arg2: memref<32x128xf32, #tpu.memory_space<vmem>>, %arg3: memref<1x128xf32, #tpu.memory_space<vmem>>, %arg4: memref<8x1xi32, #tpu.memory_space<vmem>>, %arg5: memref<8x128xf32, #tpu.memory_space<vmem>>) attributes {dimension_semantics = [#tpu.dimension_semantics<parallel>], iteration_bounds = array<i64: 1>, scalar_prefetch = 0 : i64, scratch_operands = 0 : i64, tpu.core_type = #tpu.core_type<tc>, window_params = [{transform_indices = @transform_0, window_bounds = array<i64: 16, 8, 32>}, {pipeline_mode = #tpu.pipeline_mode<synchronous>, transform_indices = @transform_1, window_bounds = array<i64: 32, 128>}, {pipeline_mode = #tpu.pipeline_mode<synchronous>, transform_indices = @transform_2, window_bounds = array<i64: 1, 128>}, {transform_indices = @transform_3, window_bounds = array<i64: 8, 1>}, {transform_indices = @transform_4, window_bounds = array<i64: 8, 128>}]} {
    %c0 = arith.constant 0 : index
    %c0_0 = arith.constant 0 : index
    %c0_1 = arith.constant 0 : index
    %0 = vector.load %arg1[%c0, %c0_0, %c0_1] : memref<16x8x32xf32, #tpu.memory_space<vmem>>, vector<16x8x32xf32>
    %1 = vector.shape_cast %0 : vector<16x8x32xf32> to vector<128x32xf32>
    %c0_2 = arith.constant 0 : index
    %c0_3 = arith.constant 0 : index
    %2 = vector.load %arg2[%c0_2, %c0_3] : memref<32x128xf32, #tpu.memory_space<vmem>>, vector<32x128xf32>
    %cst = arith.constant dense<0.000000e+00> : vector<128x128xf32>
    %3 = tpu.matmul %1, %2, %cst {dimension_numbers = #tpu.dot_dimension_numbers<[1], [0], [0], [1], [0, 0, 1, 1], [], []>} : vector<128x32xf32>, vector<32x128xf32>, vector<128x128xf32> -> vector<128x128xf32>
    %4 = vector.shape_cast %3 : vector<128x128xf32> to vector<16x8x128xf32>
    %cst_4 = arith.constant dense<0xFF800000> : vector<8x128xf32>
    %5 = vector.multi_reduction <maximumf>, %4, %cst_4 [0] : vector<16x8x128xf32> to vector<8x128xf32>
    %6 = vector.shape_cast %5 : vector<8x128xf32> to vector<1x8x128xf32>
    %7 = vector.broadcast %6 : vector<1x8x128xf32> to vector<16x8x128xf32>
    %8 = arith.subf %4, %7 : vector<16x8x128xf32>
    %9 = math.exp %8 : vector<16x8x128xf32>
    %cst_5 = arith.constant dense<0.000000e+00> : vector<8x128xf32>
    %10 = vector.multi_reduction <add>, %9, %cst_5 [0] : vector<16x8x128xf32> to vector<8x128xf32>
    %11 = math.log %10 : vector<8x128xf32>
    %12 = arith.addf %5, %11 : vector<8x128xf32>
    %c0_6 = arith.constant 0 : index
    %c0_7 = arith.constant 0 : index
    %13 = vector.load %arg3[%c0_6, %c0_7] : memref<1x128xf32, #tpu.memory_space<vmem>>, vector<1x128xf32>
    %14 = vector.broadcast %13 : vector<1x128xf32> to vector<8x128xf32>
    %15 = arith.addf %12, %14 : vector<8x128xf32>
    %c0_8 = arith.constant 0 : index
    %c0_9 = arith.constant 0 : index
    %16 = vector.load %arg4[%c0_8, %c0_9] : memref<8x1xi32, #tpu.memory_space<vmem>>, vector<8x1xi32>
    %17 = tpu.iota {dimensions = array<i32: 1>} : vector<8x128xi32>
    %18 = vector.broadcast %16 : vector<8x1xi32> to vector<8x128xi32>
    %19 = arith.cmpi eq, %17, %18 : vector<8x128xi32>
    %20 = arith.extui %19 : vector<8x128xi1> to vector<8x128xi32>
    %21 = arith.sitofp %20 : vector<8x128xi32> to vector<8x128xf32>
    %22 = arith.mulf %15, %21 : vector<8x128xf32>
    %cst_10 = arith.constant dense<0.000000e+00> : vector<8xf32>
    %23 = vector.multi_reduction <add>, %22, %cst_10 [1] : vector<8x128xf32> to vector<8xf32>
    %24 = vector.shape_cast %23 : vector<8xf32> to vector<8x1xf32>
    %cst_11 = arith.constant dense<0xFF800000> : vector<8xf32>
    %25 = vector.multi_reduction <maximumf>, %15, %cst_11 [1] : vector<8x128xf32> to vector<8xf32>
    %26 = vector.shape_cast %25 : vector<8xf32> to vector<8x1xf32>
    %27 = vector.broadcast %26 : vector<8x1xf32> to vector<8x128xf32>
    %28 = arith.subf %15, %27 : vector<8x128xf32>
    %29 = math.exp %28 : vector<8x128xf32>
    %cst_12 = arith.constant dense<0.000000e+00> : vector<8xf32>
    %30 = vector.multi_reduction <add>, %29, %cst_12 [1] : vector<8x128xf32> to vector<8xf32>
    %31 = vector.shape_cast %30 : vector<8xf32> to vector<8x1xf32>
    %32 = math.log %31 : vector<8x1xf32>
    %33 = arith.addf %26, %32 : vector<8x1xf32>
    %34 = arith.subf %33, %24 : vector<8x1xf32>
    %35 = vector.shape_cast %34 : vector<8x1xf32> to vector<8x1xf32>
    %36 = vector.broadcast %35 : vector<8x1xf32> to vector<8x128xf32>
    %c0_13 = arith.constant 0 : index
    %c0_14 = arith.constant 0 : index
    %37 = vector.load %arg5[%c0_13, %c0_14] : memref<8x128xf32, #tpu.memory_space<vmem>>, vector<8x128xf32>
    tpu.vector_store %arg5[%c0_13, %c0_14], %36 {strides = array<i32>} : memref<8x128xf32, #tpu.memory_space<vmem>>, vector<8x128xf32>,
    return
  }
  func.func @transform_0(%arg0: i32) -> (i32, i32, i32) {
    %c0_i32 = arith.constant 0 : i32
    %c0_i32_0 = arith.constant 0 : i32
    %c0_i32_1 = arith.constant 0 : i32
    return %c0_i32, %arg0, %c0_i32_0 : i32, i32, i32
  }
  func.func @transform_1(%arg0: i32) -> (i32, i32) {
    %c0_i32 = arith.constant 0 : i32
    %c0_i32_0 = arith.constant 0 : i32
    %c0_i32_1 = arith.constant 0 : i32
    return %c0_i32, %c0_i32_0 : i32, i32
  }
  func.func @transform_2(%arg0: i32) -> (i32, i32) {
    %c0_i32 = arith.constant 0 : i32
    %c0_i32_0 = arith.constant 0 : i32
    %c0_i32_1 = arith.constant 0 : i32
    return %c0_i32, %c0_i32_0 : i32, i32
  }
  func.func @transform_3(%arg0: i32) -> (i32, i32) {
    %c0_i32 = arith.constant 0 : i32
    %c0_i32_0 = arith.constant 0 : i32
    return %arg0, %c0_i32 : i32, i32
  }
  func.func @transform_4(%arg0: i32) -> (i32, i32) {
    %c0_i32 = arith.constant 0 : i32
    %c0_i32_0 = arith.constant 0 : i32
    return %arg0, %c0_i32 : i32, i32
  }
}

</mosaic_0001>

<llo_original>
// kernel: tpu_custom_call.1
$region0: #{tpu_custom_call.1}
  #allocation0 [shape = 'u32[]', space=smem, size = 0x4, offset = 0x4, fixed_abs, tag = 'smem constant byte address 0x4 - core index']
  #allocation1 [shape = 'u32[144,128]{1,0:T(1,128)}', space=vmem, size = 0x12000, scoped, tag = 'internal scratch']
  %s0 = inlined_call_operand.hbm [shape: f32[16,8,32], index: 0, kind: input, shape index: {}]
  %s1 = inlined_call_operand.hbm [shape: f32[32,128], index: 1, kind: input, shape index: {}]
  %s2 = inlined_call_operand.vmem [shape: f32[1,128], index: 2, kind: input, shape index: {}]
  %s3 = inlined_call_operand.vmem [shape: s32[8,1], index: 3, kind: input, shape index: {}]
  %s4 = inlined_call_operand.hbm [shape: f32[8,128], index: 4, kind: output, shape index: {}]
  %s5 = sld [smem:[#allocation0]]
  $region34: #{tpu_custom_call.1} parent=0
    _
  %s7 = ssub.s32 1, %s5
  %s8 = scalar_select 0, %s7, %s5
  $region1: #{tpu_custom_call.1} parent=0
    #allocation2 [shape = 'u8[65536]{0}', space=vmem, size = 0x10000, scoped, tag = 'input window, operand 0, single buffered']
    #allocation3 [shape = 's32[1]{0}', space=sflag, size = 0x4, scoped, tag = 'scoped memory for tpu_custom_call.1']
    #allocation4 [shape = 's32[1]{0}', space=sflag, size = 0x4, scoped, tag = 'scoped memory for tpu_custom_call.1']
    #allocation5 [shape = 'u8[16384]{0}', space=vmem, size = 0x4000, scoped, tag = 'input window, operand 1, single buffered']
    #allocation6 [shape = 's32[1]{0}', space=sflag, size = 0x4, scoped, tag = 'scoped memory for tpu_custom_call.1']
    #allocation7 [shape = 'u8[4096]{0}', space=vmem, size = 0x1000, scoped, tag = 'output window, operand 0, single buffered']
    %9 = vsyncpa [#allocation3], 0
    %10 = vsyncpa [#allocation6], 0
    %11 = vsyncpa [#allocation4], 0
    // Predicated region
    $region2: #{tpu_custom_call.1} parent=1 // pred_check
      _
    $region3: #{tpu_custom_call.1} parent=1 // pred_check_branch
      %13 = sbr.rel (0) target = $region5
    $region4: #{tpu_custom_call.1} parent=1 // pred_region
      %s15 = ssub.s32 2048, 2048
      %16 = vsyncadd [#allocation3], %s15
      %s17 = sshll.u32 [#allocation2], 4
      %s18 = int_to_ptr.vmem [resolvable:$true] %s17
      %23 = dma.hbm_to_vmem [thread:$0]  %s0, 2048, %s18, [#allocation3], 128, 128, 8
    $region5: #{tpu_custom_call.1} parent=1 // pred_fallthru
      _
    // Predicated region
    $region6: #{tpu_custom_call.1} parent=1 // pred_check
      _
    $region7: #{tpu_custom_call.1} parent=1 // pred_check_branch
      %25 = sbr.rel (0) target = $region9
    $region8: #{tpu_custom_call.1} parent=1 // pred_region
      %s27 = ssub.s32 512, 512
      %28 = vsyncadd [#allocation6], %s27
      %s29 = sshll.u32 [#allocation5], 4
      %s30 = int_to_ptr.vmem [resolvable:$true] %s29
      %35 = dma.hbm_to_vmem [thread:$0]  %s1, 512, %s30, [#allocation6], 128, 128, 8
    $region9: #{tpu_custom_call.1} parent=1 // pred_fallthru
      _
    // Predicated region
    $region10: #{tpu_custom_call.1} parent=1 // pred_check
      _
    $region11: #{tpu_custom_call.1} parent=1 // pred_check_branch
      %37 = sbr.rel (0) target = $region13
    $region12: #{tpu_custom_call.1} parent=1 // pred_region
      _
    $region13: #{tpu_custom_call.1} parent=1 // pred_fallthru
      _
    // Predicated region
    $region14: #{tpu_custom_call.1} parent=1 // pred_check
      _
    $region15: #{tpu_custom_call.1} parent=1 // pred_check_branch
      %39 = sbr.rel (0) target = $region17
    $region16: #{tpu_custom_call.1} parent=1 // pred_region
      _
    $region17: #{tpu_custom_call.1} parent=1 // pred_fallthru
      _
    // Predicated region
    $region18: #{tpu_custom_call.1} parent=1 // pred_check
      _
    $region19: #{tpu_custom_call.1} parent=1 // pred_check_branch
      %41 = sbr.rel (0) target = $region21
    $region20: #{tpu_custom_call.1} parent=1 // pred_region
      %42 = dma.done [#allocation3], 2048
    $region21: #{tpu_custom_call.1} parent=1 // pred_fallthru
      _
    // Predicated region
    $region22: #{tpu_custom_call.1} parent=1 // pred_check
      _
    $region23: #{tpu_custom_call.1} parent=1 // pred_check_branch
      %44 = sbr.rel (0) target = $region25
    $region24: #{tpu_custom_call.1} parent=1 // pred_region
      %45 = dma.done [#allocation6], 512
    $region25: #{tpu_custom_call.1} parent=1 // pred_fallthru
      _
    %v46 = vld [vmem:[#allocation2] sm:$0xff]
    %v47 = vld [vmem:[#allocation2 + $0x8] sm:$0xff]
    %v48 = vld [vmem:[#allocation2 + $0x10] sm:$0xff]
    %v49 = vld [vmem:[#allocation2 + $0x18] sm:$0xff]
    %v50 = vld [vmem:[#allocation2 + $0x20] sm:$0xff]
    %v51 = vld [vmem:[#allocation2 + $0x28] sm:$0xff]
    %v52 = vld [vmem:[#allocation2 + $0x30] sm:$0xff]
    %v53 = vld [vmem:[#allocation2 + $0x38] sm:$0xff]
    %v54 = vld [vmem:[#allocation2 + $0x40] sm:$0xff]
    %v55 = vld [vmem:[#allocation2 + $0x48] sm:$0xff]
    %v56 = vld [vmem:[#allocation2 + $0x50] sm:$0xff]
    %v57 = vld [vmem:[#allocation2 + $0x58] sm:$0xff]
    %v58 = vld [vmem:[#allocation2 + $0x60] sm:$0xff]
    %v59 = vld [vmem:[#allocation2 + $0x68] sm:$0xff]
    %v60 = vld [vmem:[#allocation2 + $0x70] sm:$0xff]
    %v61 = vld [vmem:[#allocation2 + $0x78] sm:$0xff]
    %v62 = vld [vmem:[#allocation5] sm:$0xff]
    %v63 = vld [vmem:[#allocation5 + $0x8] sm:$0xff]
    %v64 = vld [vmem:[#allocation5 + $0x10] sm:$0xff]
    %v65 = vld [vmem:[#allocation5 + $0x18] sm:$0xff]
    %vm66 = vcmask 261120
    %v68 = vsel %vm66, %v46, 0
    %v71 = vsel %vm66, %v47, 0
    %v74 = vsel %vm66, %v48, 0
    %v77 = vsel %vm66, %v49, 0
    %v80 = vsel %vm66, %v50, 0
    %v83 = vsel %vm66, %v51, 0
    %v86 = vsel %vm66, %v52, 0
    %v89 = vsel %vm66, %v53, 0
    %v92 = vsel %vm66, %v54, 0
    %v95 = vsel %vm66, %v55, 0
    %v98 = vsel %vm66, %v56, 0
    %v101 = vsel %vm66, %v57, 0
    %v104 = vsel %vm66, %v58, 0
    %v107 = vsel %vm66, %v59, 0
    %v110 = vsel %vm66, %v60, 0
    %v113 = vsel %vm66, %v61, 0
    %115 = vmatprep.subr.mxu0 0.0
    %116 = vmatpush1.msra.mxu0 %v62
    %117 = vmatprep.subr.mxu0 0.0
    %118 = vmatpush1.msra.mxu0 %v63
    %119 = vmatprep.subr.mxu0 0.0
    %120 = vmatpush1.msra.mxu0 %v64
    %121 = vmatprep.subr.mxu0 0.0
    %122 = vmatpush1.msra.mxu0 %v65
    %123 = vmatprep.subr.mxu0 0.0
    %124 = vmatpush1.msra.mxu0 0.0
    %125 = vmatprep.subr.mxu0 0.0
    %126 = vmatpush1.msra.mxu0 0.0
    %127 = vmatprep.subr.mxu0 0.0
    %128 = vmatpush1.msra.mxu0 0.0
    %129 = vmatprep.subr.mxu0 0.0
    %130 = vmatpush1.msra.mxu0 0.0
    %131 = vmatprep.subr.mxu0 0.0
    %132 = vmatpush1.msra.mxu0 0.0
    %133 = vmatprep.subr.mxu0 0.0
    %134 = vmatpush1.msra.mxu0 0.0
    %135 = vmatprep.subr.mxu0 0.0
    %136 = vmatpush1.msra.mxu0 0.0
    %137 = vmatprep.subr.mxu0 0.0
    %138 = vmatpush1.msra.mxu0 0.0
    %139 = vmatprep.subr.mxu0 0.0
    %140 = vmatpush1.msra.mxu0 0.0
    %141 = vmatprep.subr.mxu0 0.0
    %142 = vmatpush1.msra.mxu0 0.0
    %143 = vmatprep.subr.mxu0 0.0
    %144 = vmatpush1.msra.mxu0 0.0
    %145 = vmatprep.subr.mxu0 0.0
    %146 = vmatpush1.msra.mxu0 0.0
    %147 = vmatprep.subr.mxu0 0.0
    %148 = vmatpush1.msra.mxu0 0.0
    %149 = vmatprep.subr.mxu0 0.0
    %150 = vmatpush1.msra.mxu0 0.0
    %151 = vmatprep.subr.mxu0 0.0
    %152 = vmatpush1.msra.mxu0 0.0
    %153 = vmatprep.subr.mxu0 0.0
    %154 = vmatpush1.msra.mxu0 0.0
    %155 = vmatprep.subr.mxu0 0.0
    %156 = vmatpush1.msra.mxu0 0.0
    %157 = vmatprep.subr.mxu0 0.0
    %158 = vmatpush1.msra.mxu0 0.0
    %159 = vmatprep.subr.mxu0 0.0
    %160 = vmatpush1.msra.mxu0 0.0
    %161 = vmatprep.subr.mxu0 0.0
    %162 = vmatpush1.msra.mxu0 0.0
    %163 = vmatprep.subr.mxu0 0.0
    %164 = vmatpush1.msra.mxu0 0.0
    %165 = vmatprep.subr.mxu0 0.0
    %166 = vmatpush1.msra.mxu0 0.0
    %167 = vmatprep.subr.mxu0 0.0
    %168 = vmatpush1.msra.mxu0 0.0
    %169 = vmatprep.subr.mxu0 0.0
    %170 = vmatpush1.msra.mxu0 0.0
    %171 = vmatprep.subr.mxu0 0.0
    %172 = vmatpush1.msra.mxu0 0.0
    %173 = vmatprep.subr.mxu0 0.0
    %174 = vmatpush1.msra.mxu0 0.0
    %175 = vmatprep.subr.mxu0 0.0
    %176 = vmatpush1.msra.mxu0 0.0
    %177 = vmatprep.subr.mxu0 0.0
    %178 = vmatpush1.msra.mxu0 0.0
    %179 = vmatprep.mubr.f32.mxu0 0.0
    %180 = vmatmul.mubr.f32.gmra.mrb[0].mxu0 %v68
    %v181 = vpop.f32.mrb[0].mxu0
    %v182 = vadd.f32 0.0, %v181
    %v183 = vpop.f32.mrb[0].mxu0
    %184 = vmatprep.mubr.f32.mxu0 0.0
    %185 = vmatmul.mubr.f32.gmra.mrb[0].mxu0 %v71
    %v186 = vpop.f32.mrb[0].mxu0
    %v187 = vadd.f32 0.0, %v186
    %v188 = vpop.f32.mrb[0].mxu0
    %189 = vmatprep.mubr.f32.mxu0 0.0
    %190 = vmatmul.mubr.f32.gmra.mrb[0].mxu0 %v74
    %v191 = vpop.f32.mrb[0].mxu0
    %v192 = vadd.f32 0.0, %v191
    %v193 = vpop.f32.mrb[0].mxu0
    %194 = vmatprep.mubr.f32.mxu0 0.0
    %195 = vmatmul.mubr.f32.gmra.mrb[0].mxu0 %v77
    %v196 = vpop.f32.mrb[0].mxu0
    %v197 = vadd.f32 0.0, %v196
    %v198 = vpop.f32.mrb[0].mxu0
    %199 = vmatprep.mubr.f32.mxu0 0.0
    %200 = vmatmul.mubr.f32.gmra.mrb[0].mxu0 %v80
    %v201 = vpop.f32.mrb[0].mxu0
    %v202 = vadd.f32 0.0, %v201
    %v203 = vpop.f32.mrb[0].mxu0
    %204 = vmatprep.mubr.f32.mxu0 0.0
    %205 = vmatmul.mubr.f32.gmra.mrb[0].mxu0 %v83
    %v206 = vpop.f32.mrb[0].mxu0
    %v207 = vadd.f32 0.0, %v206
    %v208 = vpop.f32.mrb[0].mxu0
    %209 = vmatprep.mubr.f32.mxu0 0.0
    %210 = vmatmul.mubr.f32.gmra.mrb[0].mxu0 %v86
    %v211 = vpop.f32.mrb[0].mxu0
    %v212 = vadd.f32 0.0, %v211
    %v213 = vpop.f32.mrb[0].mxu0
    %214 = vmatprep.mubr.f32.mxu0 0.0
    %215 = vmatmul.mubr.f32.gmra.mrb[0].mxu0 %v89
    %v216 = vpop.f32.mrb[0].mxu0
    %v217 = vadd.f32 0.0, %v216
    %v218 = vpop.f32.mrb[0].mxu0
    %219 = vmatprep.mubr.f32.mxu0 0.0
    %220 = vmatmul.mubr.f32.gmra.mrb[0].mxu0 %v92
    %v221 = vpop.f32.mrb[0].mxu0
    %v222 = vadd.f32 0.0, %v221
    %v223 = vpop.f32.mrb[0].mxu0
    %224 = vmatprep.mubr.f32.mxu0 0.0
    %225 = vmatmul.mubr.f32.gmra.mrb[0].mxu0 %v95
    %v226 = vpop.f32.mrb[0].mxu0
    %v227 = vadd.f32 0.0, %v226
    %v228 = vpop.f32.mrb[0].mxu0
    %229 = vmatprep.mubr.f32.mxu0 0.0
    %230 = vmatmul.mubr.f32.gmra.mrb[0].mxu0 %v98
    %v231 = vpop.f32.mrb[0].mxu0
    %v232 = vadd.f32 0.0, %v231
    %v233 = vpop.f32.mrb[0].mxu0
    %234 = vmatprep.mubr.f32.mxu0 0.0
    %235 = vmatmul.mubr.f32.gmra.mrb[0].mxu0 %v101
    %v236 = vpop.f32.mrb[0].mxu0
    %v237 = vadd.f32 0.0, %v236
    %v238 = vpop.f32.mrb[0].mxu0
    %239 = vmatprep.mubr.f32.mxu0 0.0
    %240 = vmatmul.mubr.f32.gmra.mrb[0].mxu0 %v104
    %v241 = vpop.f32.mrb[0].mxu0
    %v242 = vadd.f32 0.0, %v241
    %v243 = vpop.f32.mrb[0].mxu0
    %244 = vmatprep.mubr.f32.mxu0 0.0
    %245 = vmatmul.mubr.f32.gmra.mrb[0].mxu0 %v107
    %v246 = vpop.f32.mrb[0].mxu0
    %v247 = vadd.f32 0.0, %v246
    %v248 = vpop.f32.mrb[0].mxu0
    %249 = vmatprep.mubr.f32.mxu0 0.0
    %250 = vmatmul.mubr.f32.gmra.mrb[0].mxu0 %v110
    %v251 = vpop.f32.mrb[0].mxu0
    %v252 = vadd.f32 0.0, %v251
    %v253 = vpop.f32.mrb[0].mxu0
    %254 = vmatprep.mubr.f32.mxu0 0.0
    %255 = vmatmul.mubr.f32.gmra.mrb[0].mxu0 %v113
    %v256 = vpop.f32.mrb[0].mxu0
    %v257 = vadd.f32 0.0, %v256
    %v258 = vpop.f32.mrb[0].mxu0
    %259 = vdwg.mxu0
    %v260 = vmax.f32 %v182, %v202
    %v261 = vmax.f32 %v187, %v207
    %v262 = vmax.f32 %v192, %v212
    %v263 = vmax.f32 %v197, %v217
    %v264 = vmax.f32 %v260, %v222
    %v265 = vmax.f32 %v261, %v227
    %v266 = vmax.f32 %v262, %v232
    %v267 = vmax.f32 %v263, %v237
    %v268 = vmax.f32 %v264, %v242
    %v269 = vmax.f32 %v265, %v247
    %v270 = vmax.f32 %v266, %v252
    %v271 = vmax.f32 %v267, %v257
    %v272 = vmax.f32 %v268, %v269
    %v273 = vmax.f32 %v270, %v271
    %v274 = vmax.f32 %v272, %v273
    %v275 = vsub.f32 %v182, %v274
    %v276 = vsub.f32 %v187, %v274
    %v277 = vsub.f32 %v192, %v274
    %v278 = vsub.f32 %v197, %v274
    %v279 = vsub.f32 %v202, %v274
    %v280 = vsub.f32 %v207, %v274
    %v281 = vsub.f32 %v212, %v274
    %v282 = vsub.f32 %v217, %v274
    %v283 = vsub.f32 %v222, %v274
    %v284 = vsub.f32 %v227, %v274
    %v285 = vsub.f32 %v232, %v274
    %v286 = vsub.f32 %v237, %v274
    %v287 = vsub.f32 %v242, %v274
    %v288 = vsub.f32 %v247, %v274
    %v289 = vsub.f32 %v252, %v274
    %v290 = vsub.f32 %v257, %v274
    %v291 = vmul.f32 %v275, 1.442695
    %v292 = vpow.pop %v291
    %v293 = vmul.f32 %v276, 1.442695
    %v294 = vpow.pop %v293
    %v295 = vmul.f32 %v277, 1.442695
    %v296 = vpow.pop %v295
    %v297 = vmul.f32 %v278, 1.442695
    %v298 = vpow.pop %v297
    %v299 = vmul.f32 %v279, 1.442695
    %v300 = vpow.pop %v299
    %v301 = vmul.f32 %v280, 1.442695
    %v302 = vpow.pop %v301
    %v303 = vmul.f32 %v281, 1.442695
    %v304 = vpow.pop %v303
    %v305 = vmul.f32 %v282, 1.442695
    %v306 = vpow.pop %v305
    %v307 = vmul.f32 %v283, 1.442695
    %v308 = vpow.pop %v307
    %v309 = vmul.f32 %v284, 1.442695
    %v310 = vpow.pop %v309
    %v311 = vmul.f32 %v285, 1.442695
    %v312 = vpow.pop %v311
    %v313 = vmul.f32 %v286, 1.442695
    %v314 = vpow.pop %v313
    %v315 = vmul.f32 %v287, 1.442695
    %v316 = vpow.pop %v315
    %v317 = vmul.f32 %v288, 1.442695
    %v318 = vpow.pop %v317
    %v319 = vmul.f32 %v289, 1.442695
    %v320 = vpow.pop %v319
    %v321 = vmul.f32 %v290, 1.442695
    %v322 = vpow.pop %v321
    %v323 = vadd.f32 %v292, %v294
    %v324 = vadd.f32 %v323, %v296
    %v325 = vadd.f32 %v324, %v298
    %v326 = vadd.f32 %v325, %v300
    %v327 = vadd.f32 %v326, %v302
    %v328 = vadd.f32 %v327, %v304
    %v329 = vadd.f32 %v328, %v306
    %v330 = vadd.f32 %v329, %v308
    %v331 = vadd.f32 %v330, %v310
    %v332 = vadd.f32 %v331, %v312
    %v333 = vadd.f32 %v332, %v314
    %v334 = vadd.f32 %v333, %v316
    %v335 = vadd.f32 %v334, %v318
    %v336 = vadd.f32 %v335, %v320
    %v337 = vadd.f32 %v336, %v322
    %v338 = vlog2.pop %v337
    %v339 = vmul.f32 %v338, 0.6931472
    %v340 = vadd.f32 %v274, %v339
    %v341 = vld [vmem:[%s2] sm:$0x1]
    %v343 = vlaneseq
    %v344 = vshrl.u32 %v343, 7
    %v345 = vsub.s32 0, %v344
    %v346 = vrot.slane %v341, %v345
    %v348 = vadd.f32 %v340, %v346
    %v349 = vld [vmem:[%s3] sm:$0xff]
    %v350 = vlaneseq
    %v351 = vand.u32 %v350, 127
    %352 = vset.pattern.permute.xlu0 0
    %353 = vperm.xlu0 %352, %v349
    %v354 = vpop.permute.xlu0 %353
    %vm355 = vcmp.eq.s32.totalorder %v351, %v354
    %v356 = vsel %vm355, 1, 0
    %v357 = vcvt.s32.f32 %v356
    %v358 = vmul.f32 %v348, %v357
    %359 = vadd.xlane.f32.xlu0 %v358
    %v360 = vpop.xlane.xlu0 %359
    %361 = vmax.xlane.f32.xlu0 %v348
    %v362 = vpop.xlane.xlu0 %361
    %v363 = vsub.f32 %v348, %v362
    %v364 = vmul.f32 %v363, 1.442695
    %v365 = vpow.pop %v364
    %366 = vadd.xlane.f32.xlu0 %v365
    %v367 = vpop.xlane.xlu0 %366
    %v368 = vlog2.pop %v367
    %v369 = vmul.f32 %v368, 0.6931472
    %v370 = vadd.f32 %v362, %v369
    %v371 = vsub.f32 %v370, %v360
    %372 = vst [vmem:[#allocation7] sm:$0xff] %v371
    // Predicated region
    $region26: #{tpu_custom_call.1} parent=1 // pred_check
      _
    $region27: #{tpu_custom_call.1} parent=1 // pred_check_branch
      %374 = sbr.rel (0) target = $region29
    $region28: #{tpu_custom_call.1} parent=1 // pred_region
      %s376 = ssub.s32 128, 128
      %377 = vsyncadd [#allocation4], %s376
      %s379 = sshll.u32 [#allocation7], 4
      %s380 = int_to_ptr.vmem [resolvable:$true] %s379
      %382 = dma.vmem_to_hbm [thread:$0]  %s380, 128, %s4, [#allocation4]
    $region29: #{tpu_custom_call.1} parent=1 // pred_fallthru
      _
    // Predicated region
    $region30: #{tpu_custom_call.1} parent=1 // pred_check
      _
    $region31: #{tpu_custom_call.1} parent=1 // pred_check_branch
      %384 = sbr.rel (0) target = $region33
    $region32: #{tpu_custom_call.1} parent=1 // pred_region
      %385 = dma.done [#allocation4], 128
    $region33: #{tpu_custom_call.1} parent=1 // pred_fallthru
      _
    %386 = vsyncpa [#allocation3], 1
    %387 = vsyncpa [#allocation6], 1
    %388 = vsyncpa [#allocation4], 1

</llo_original>
